<compile_context>
chip_gen: v5e
topology: v5e:2x2
jax: 0.10.0
libtpu: 0.0.40
codegen_flags: <defaults>
</compile_context>

<pallas_src>
import functools

import jax
import jax.numpy as jnp
import numpy as np
from jax.experimental import pallas as pl
from jax.experimental.pallas import tpu as pltpu

_LANE = 128


def _round_up(n, m):
    return (n + m - 1) // m * m


def _pick_t_tile(t_out, cin_f, coutp, in_bytes, out_bytes,
                 budget_bytes=8 * 1024 * 1024, t_max=2048):
    """Pick a time tile whose double-buffered blocks fit a conservative VMEM
    budget (safe on v5e 16MiB scoped default and v7x 64MiB physical)."""
    per_row = 2 * (cin_f * in_bytes + coutp * out_bytes)   # 2x: double buffering
    t = max(8, min(t_max, budget_bytes // max(per_row, 1)))
    return max(8, (int(t) // 8) * 8)


def _wavenet_kernel(xc_ref, w_in_ref, b_in_ref, w_out_ref, b_out_ref, out_ref,
                    *, r_pad):
    # xc_ref: (1, t_tile, K*Cr + Cc)  fused [x taps | cond] operand (bf16/f32)
    xc = xc_ref[0]

    # Fused dilated-conv taps + conditioning 1x1: ONE MXU matmul, f32 accumulate.
    acc = jnp.dot(xc, w_in_ref[...], preferred_element_type=jnp.float32)
    acc = acc + b_in_ref[...]                    # single fused (conv_b + cond_b) add

    # chunk(2, channel): gate = first half, output = second half
    # (lane-aligned split at r_pad, a multiple of 128).
    gate = jax.nn.sigmoid(acc[:, :r_pad])        # f32 VPU/EUP work
    outp = jnp.tanh(acc[:, r_pad:])
    h = (gate * outp).astype(w_out_ref.dtype)

    # Fused residual+skip 1x1: ONE MXU matmul, one lane-dense store.
    y = jnp.dot(h, w_out_ref[...], preferred_element_type=jnp.float32)
    y = y + b_out_ref[...]
    out_ref[0] = y.astype(out_ref.dtype)


def wavenet_layer(x_nct, c_nct, params, *, kernel_size=2, dilation=1,
                  causal_input=False, compute_dtype=jnp.bfloat16,
                  out_dtype=None, t_tile=None, pad_lanes=True):
    """x_nct: (B, Cr, T), c_nct: (B, Cc, T_out). Returns (residual, skip) in NCT."""
    B, Cr, T = x_nct.shape
    Cc = c_nct.shape[1]
    Cs = params["skip_w"].shape[0]
    K = kernel_size
    out_dtype = x_nct.dtype if out_dtype is None else out_dtype

    pad = dilation * (K - 1)
    if causal_input:
        # TODO(synk): handle the causal left boundary with an in-kernel zero halo
        # instead of materializing a left-padded copy of x in HBM.
        x_nct = jnp.pad(x_nct, ((0, 0), (0, 0), (pad, 0)))
    T_in = x_nct.shape[2]
    t_out = T_in - pad
    assert c_nct.shape[2] == t_out

    # Lane-padded channel geometry (no-op when channels are already 128-multiples).
    Crp = _round_up(Cr, _LANE) if pad_lanes else Cr
    Coutp = _round_up(Cr + Cs, _LANE) if pad_lanes else Cr + Cs
    Cin_f = K * Cr + Cc

    # Fused input operand: downcast fused into a single NCT->NTC transpose
    # (half the bytes moved), then concat the K shifted taps + conditioning.
    x_ntc = jnp.transpose(x_nct.astype(compute_dtype), (0, 2, 1))   # (B, T_in, Cr)
    c_ntc = jnp.transpose(c_nct.astype(compute_dtype), (0, 2, 1))   # (B, t_out, Cc)
    taps = [x_ntc[:, k * dilation:k * dilation + t_out, :] for k in range(K)]
    taps.append(c_ntc)
    xc = jnp.concatenate(taps, axis=-1)                             # (B, t_out, Cin_f)

    # Time tiling.
    if t_tile is None:
        t_tile = _pick_t_tile(t_out, Cin_f, Coutp,
                              jnp.dtype(compute_dtype).itemsize,
                              jnp.dtype(out_dtype).itemsize)
    t_tile = min(int(t_tile), t_out)
    if t_tile < t_out:
        t_tile = max(8, (t_tile // 8) * 8)
    n_t = pl.cdiv(t_out, t_tile)
    t_out_p = n_t * t_tile
    if t_out_p != t_out:
        xc = jnp.pad(xc, ((0, 0), (0, t_out_p - t_out), (0, 0)))

    # Fused weights. PyTorch conv weight layout is (Cout, Cin, K); gate is
    # out-channels [0, Cr), output is [Cr, 2Cr). Each half's columns are padded
    # to Crp so the in-kernel chunk split lands on a lane boundary.
    f32 = jnp.float32
    conv_w = params["conv_w"].astype(f32)                  # (2Cr, Cr, K)
    cond_w = params["cond_w"].astype(f32)                  # (2Cr, Cc, 1)
    gate_rows = [conv_w[:Cr, :, k].T for k in range(K)] + [cond_w[:Cr, :, 0].T]
    outp_rows = [conv_w[Cr:, :, k].T for k in range(K)] + [cond_w[Cr:, :, 0].T]
    w_gate = jnp.pad(jnp.concatenate(gate_rows, axis=0), ((0, 0), (0, Crp - Cr)))
    w_outp = jnp.pad(jnp.concatenate(outp_rows, axis=0), ((0, 0), (0, Crp - Cr)))
    w_in = jnp.concatenate([w_gate, w_outp], axis=1).astype(compute_dtype)  # (Cin_f, 2Crp)

    b_fused = params["conv_b"].astype(f32) + params["cond_b"].astype(f32)
    b_in = jnp.concatenate([jnp.pad(b_fused[:Cr], (0, Crp - Cr)),
                            jnp.pad(b_fused[Cr:], (0, Crp - Cr))]).reshape(1, 2 * Crp)

    w_rs = jnp.concatenate([params["res_w"][:, :, 0].T,
                            params["skip_w"][:, :, 0].T], axis=1).astype(f32)  # (Cr, Cr+Cs)
    w_out = jnp.pad(w_rs, ((0, Crp - Cr), (0, Coutp - (Cr + Cs)))).astype(compute_dtype)
    b_rs = jnp.concatenate([params["res_b"], params["skip_b"]]).astype(f32)
    b_out = jnp.pad(b_rs, (0, Coutp - (Cr + Cs))).reshape(1, Coutp)

    kernel = functools.partial(_wavenet_kernel, r_pad=Crp)
    bcast = lambda b, t: (0, 0)

    y = pl.pallas_call(
        kernel,
        out_shape=jax.ShapeDtypeStruct((B, t_out_p, Coutp), out_dtype),
        grid_spec=pltpu.PrefetchScalarGridSpec(
            num_scalar_prefetch=0,
            grid=(B, n_t),
            in_specs=[
                pl.BlockSpec((1, t_tile, Cin_f), lambda b, t: (b, t, 0)),
                pl.BlockSpec((Cin_f, 2 * Crp), bcast),
                pl.BlockSpec((1, 2 * Crp), bcast),
                pl.BlockSpec((Crp, Coutp), bcast),
                pl.BlockSpec((1, Coutp), bcast),
            ],
            out_specs=pl.BlockSpec((1, t_tile, Coutp), lambda b, t: (b, t, 0)),
        ),
        compiler_params=pltpu.CompilerParams(
            dimension_semantics=("parallel", "parallel"),
            vmem_limit_bytes=32 * 1024 * 1024),
    )(xc, w_in, b_in, w_out, b_out)

    # Split fused (res | skip) slab, drop lane/time padding, back to NCT.
    y = y[:, :t_out, :]
    residual = jnp.transpose(y[:, :, :Cr], (0, 2, 1))
    skip = jnp.transpose(y[:, :, Cr:Cr + Cs], (0, 2, 1))
    return residual, skip


def _reference(x_nct, c_nct, params, *, kernel_size=2, dilation=1,
               causal_input=False):
    """Pure-JAX f32 reference matching PyTorch semantics (NCT layout)."""
    pad = dilation * (kernel_size - 1)
    if causal_input:
        x_nct = jnp.pad(x_nct, ((0, 0), (0, 0), (pad, 0)))
    T_in = x_nct.shape[2]
    t_out = T_in - pad
    Cr = params["res_w"].shape[0]

    acc = params["conv_b"][None, :, None]
    for k in range(kernel_size):
        xs = x_nct[:, :, k * dilation:k * dilation + t_out]
        acc = acc + jnp.einsum("oi,bit->bot", params["conv_w"][:, :, k], xs)
    acc = acc + jnp.einsum("oi,bit->bot", params["cond_w"][:, :, 0], c_nct) \
              + params["cond_b"][None, :, None]
    gate = jax.nn.sigmoid(acc[:, :Cr])
    out = jnp.tanh(acc[:, Cr:])
    h = gate * out
    res = jnp.einsum("oi,bit->bot", params["res_w"][:, :, 0], h) \
        + params["res_b"][None, :, None]
    skp = jnp.einsum("oi,bit->bot", params["skip_w"][:, :, 0], h) \
        + params["skip_b"][None, :, None]
    return res, skp


if __name__ == "__main__":
    B, Cr, Cs, Cc = 2, 8, 16, 4
    K = 2

    key = jax.random.PRNGKey(0)
    ks = jax.random.split(key, 16)
    scale = 0.1
    params = {
        "conv_w": scale * jax.random.normal(ks[0], (2 * Cr, Cr, K), jnp.float32),
        "conv_b": scale * jax.random.normal(ks[1], (2 * Cr,), jnp.float32),
        "cond_w": scale * jax.random.normal(ks[2], (2 * Cr, Cc, 1), jnp.float32),
        "cond_b": scale * jax.random.normal(ks[3], (2 * Cr,), jnp.float32),
        "res_w": scale * jax.random.normal(ks[4], (Cr, Cr, 1), jnp.float32),
        "res_b": scale * jax.random.normal(ks[5], (Cr,), jnp.float32),
        "skip_w": scale * jax.random.normal(ks[6], (Cs, Cr, 1), jnp.float32),
        "skip_b": scale * jax.random.normal(ks[7], (Cs,), jnp.float32),
    }

    configs = [
        # (T, dilation, causal, compute_dtype, forced t_tile, tol)
        (16, 1, False, jnp.float32, None, 5e-3),
        (16, 2, True, jnp.bfloat16, None, 3e-2),
        (256, 2, True, jnp.bfloat16, 64, 3e-2),   # exercises the multi-tile grid path
    ]
    for idx, (T, dilation, causal, cdt, tt, tol) in enumerate(configs):
        t_out = T if causal else T - dilation * (K - 1)
        x = jax.random.normal(ks[8 + idx], (B, Cr, T), jnp.float32)
        c = jax.random.normal(ks[12 + idx], (B, Cc, t_out), jnp.float32)

        res, skp = wavenet_layer(x, c, params, kernel_size=K, dilation=dilation,
                                 causal_input=causal, compute_dtype=cdt, t_tile=tt)
        jax.block_until_ready((res, skp))

        res_ref, skp_ref = _reference(x, c, params, kernel_size=K,
                                      dilation=dilation, causal_input=causal)
        np.testing.assert_allclose(np.asarray(res, np.float32),
                                   np.asarray(res_ref), rtol=tol, atol=tol)
        np.testing.assert_allclose(np.asarray(skp, np.float32),
                                   np.asarray(skp_ref), rtol=tol, atol=tol)

    print("KERNEL_OK")
</pallas_src>

<mosaic_0001>
module attributes {stable_mosaic.version = 11 : i64} {
  func.func @_wavenet_kernel(%arg0: i32, %arg1: i32, %arg2: memref<1x15x20xf32, #tpu.memory_space<vmem>>, %arg3: memref<20x256xf32, #tpu.memory_space<vmem>>, %arg4: memref<1x256xf32, #tpu.memory_space<vmem>>, %arg5: memref<128x128xf32, #tpu.memory_space<vmem>>, %arg6: memref<1x128xf32, #tpu.memory_space<vmem>>, %arg7: memref<1x15x128xf32, #tpu.memory_space<vmem>>) attributes {dimension_semantics = [#tpu.dimension_semantics<parallel>, #tpu.dimension_semantics<parallel>], iteration_bounds = array<i64: 2, 1>, scalar_prefetch = 0 : i64, scratch_operands = 0 : i64, tpu.core_type = #tpu.core_type<tc>, window_params = [{transform_indices = @transform_0, window_bounds = array<i64: 1, 15, 20>}, {pipeline_mode = #tpu.pipeline_mode<synchronous>, transform_indices = @transform_1, window_bounds = array<i64: 20, 256>}, {pipeline_mode = #tpu.pipeline_mode<synchronous>, transform_indices = @transform_2, window_bounds = array<i64: 1, 256>}, {pipeline_mode = #tpu.pipeline_mode<synchronous>, transform_indices = @transform_3, window_bounds = array<i64: 128, 128>}, {pipeline_mode = #tpu.pipeline_mode<synchronous>, transform_indices = @transform_4, window_bounds = array<i64: 1, 128>}, {transform_indices = @transform_5, window_bounds = array<i64: 1, 15, 128>}]} {
    %c0 = arith.constant 0 : index
    %c0_0 = arith.constant 0 : index
    %c0_1 = arith.constant 0 : index
    %0 = vector.load %arg2[%c0, %c0_0, %c0_1] : memref<1x15x20xf32, #tpu.memory_space<vmem>>, vector<1x15x20xf32>
    %1 = vector.shape_cast %0 : vector<1x15x20xf32> to vector<15x20xf32>
    %c0_2 = arith.constant 0 : index
    %c0_3 = arith.constant 0 : index
    %2 = vector.load %arg3[%c0_2, %c0_3] : memref<20x256xf32, #tpu.memory_space<vmem>>, vector<20x256xf32>
    %cst = arith.constant dense<0.000000e+00> : vector<15x256xf32>
    %3 = tpu.matmul %1, %2, %cst {dimension_numbers = #tpu.dot_dimension_numbers<[1], [0], [0], [1], [0, 0, 1, 1], [], []>} : vector<15x20xf32>, vector<20x256xf32>, vector<15x256xf32> -> vector<15x256xf32>
    %c0_4 = arith.constant 0 : index
    %c0_5 = arith.constant 0 : index
    %4 = vector.load %arg4[%c0_4, %c0_5] : memref<1x256xf32, #tpu.memory_space<vmem>>, vector<1x256xf32>
    %5 = vector.broadcast %4 : vector<1x256xf32> to vector<15x256xf32>
    %6 = arith.addf %3, %5 : vector<15x256xf32>
    %7 = vector.extract_strided_slice %6 {offsets = [0, 0], sizes = [15, 128], strides = [1, 1]} : vector<15x256xf32> to vector<15x128xf32>
    %8 = arith.negf %7 : vector<15x128xf32>
    %9 = math.exp %8 : vector<15x128xf32>
    %cst_6 = arith.constant 1.000000e+00 : f32
    %10 = vector.broadcast %cst_6 : f32 to vector<15x128xf32>
    %11 = arith.addf %10, %9 : vector<15x128xf32>
    %12 = arith.divf %10, %11 : vector<15x128xf32>
    %13 = vector.extract_strided_slice %6 {offsets = [0, 128], sizes = [15, 128], strides = [1, 1]} : vector<15x256xf32> to vector<15x128xf32>
    %14 = math.tanh %13 : vector<15x128xf32>
    %15 = arith.mulf %12, %14 : vector<15x128xf32>
    %c0_7 = arith.constant 0 : index
    %c0_8 = arith.constant 0 : index
    %16 = vector.load %arg5[%c0_7, %c0_8] : memref<128x128xf32, #tpu.memory_space<vmem>>, vector<128x128xf32>
    %cst_9 = arith.constant dense<0.000000e+00> : vector<15x128xf32>
    %17 = tpu.matmul %15, %16, %cst_9 {dimension_numbers = #tpu.dot_dimension_numbers<[1], [0], [0], [1], [0, 0, 1, 1], [], []>} : vector<15x128xf32>, vector<128x128xf32>, vector<15x128xf32> -> vector<15x128xf32>
    %c0_10 = arith.constant 0 : index
    %c0_11 = arith.constant 0 : index
    %18 = vector.load %arg6[%c0_10, %c0_11] : memref<1x128xf32, #tpu.memory_space<vmem>>, vector<1x128xf32>
    %19 = vector.broadcast %18 : vector<1x128xf32> to vector<15x128xf32>
    %20 = arith.addf %17, %19 : vector<15x128xf32>
    %c0_12 = arith.constant 0 : index
    %c0_13 = arith.constant 0 : index
    %c0_14 = arith.constant 0 : index
    %21 = vector.load %arg7[%c0_12, %c0_13, %c0_14] : memref<1x15x128xf32, #tpu.memory_space<vmem>>, vector<1x15x128xf32>
    %22 = vector.shape_cast %21 : vector<1x15x128xf32> to vector<15x128xf32>
    %23 = vector.shape_cast %20 : vector<15x128xf32> to vector<1x15x128xf32>
    tpu.vector_store %arg7[%c0_12, %c0_13, %c0_14], %23 {strides = array<i32>} : memref<1x15x128xf32, #tpu.memory_space<vmem>>, vector<1x15x128xf32>,
    return
  }
  func.func @transform_0(%arg0: i32, %arg1: i32) -> (i32, i32, i32) {
    %c0_i32 = arith.constant 0 : i32
    %c0_i32_0 = arith.constant 0 : i32
    return %arg0, %arg1, %c0_i32 : i32, i32, i32
  }
  func.func @transform_1(%arg0: i32, %arg1: i32) -> (i32, i32) {
    %c0_i32 = arith.constant 0 : i32
    %c0_i32_0 = arith.constant 0 : i32
    %c0_i32_1 = arith.constant 0 : i32
    return %c0_i32, %c0_i32_0 : i32, i32
  }
  func.func @transform_2(%arg0: i32, %arg1: i32) -> (i32, i32) {
    %c0_i32 = arith.constant 0 : i32
    %c0_i32_0 = arith.constant 0 : i32
    %c0_i32_1 = arith.constant 0 : i32
    return %c0_i32, %c0_i32_0 : i32, i32
  }
  func.func @transform_3(%arg0: i32, %arg1: i32) -> (i32, i32) {
    %c0_i32 = arith.constant 0 : i32
    %c0_i32_0 = arith.constant 0 : i32
    %c0_i32_1 = arith.constant 0 : i32
    return %c0_i32, %c0_i32_0 : i32, i32
  }
  func.func @transform_4(%arg0: i32, %arg1: i32) -> (i32, i32) {
    %c0_i32 = arith.constant 0 : i32
    %c0_i32_0 = arith.constant 0 : i32
    %c0_i32_1 = arith.constant 0 : i32
    return %c0_i32, %c0_i32_0 : i32, i32
  }
  func.func @transform_5(%arg0: i32, %arg1: i32) -> (i32, i32, i32) {
    %c0_i32 = arith.constant 0 : i32
    %c0_i32_0 = arith.constant 0 : i32
    return %arg0, %arg1, %c0_i32 : i32, i32, i32
  }
}

</mosaic_0001>

<llo_original>
// kernel: tpu_custom_call.1
$region0: #{tpu_custom_call.1}
  #allocation0 [shape = 'u32[]', space=smem, size = 0x4, offset = 0x4, fixed_abs, tag = 'smem constant byte address 0x4 - core index']
  #allocation1 [shape = 'u32[72,128]{1,0:T(1,128)}', space=vmem, size = 0x9000, scoped, tag = 'internal scratch']
  %s0 = inlined_call_operand.vmem [shape: f32[2,15,20], index: 0, kind: input, shape index: {}]
  %s1 = inlined_call_operand.vmem [shape: f32[20,256], index: 1, kind: input, shape index: {}]
  %s2 = inlined_call_operand.vmem [shape: f32[1,256], index: 2, kind: input, shape index: {}]
  %s3 = inlined_call_operand.hbm [shape: f32[128,128], index: 3, kind: input, shape index: {}]
  %s4 = inlined_call_operand.vmem [shape: f32[1,128], index: 4, kind: input, shape index: {}]
  %s5 = inlined_call_operand.vmem [shape: f32[2,15,128], index: 5, kind: output, shape index: {}]
  %s6 = sld [smem:[#allocation0]]
  $region57: #{tpu_custom_call.1} parent=0
    _
  %s8 = ssub.s32 1, %s6
  %s9 = scalar_select 0, %s8, %s6
  $region1: #{tpu_custom_call.1} parent=0
    #allocation2 [shape = 'u8[65536]{0}', space=vmem, size = 0x10000, scoped, tag = 'input window, operand 3, single buffered']
    #allocation3 [shape = 's32[2]{0}', space=sflag, size = 0x8, scoped, tag = 'scoped memory for tpu_custom_call.1']
    %10 = vsyncpa [#allocation3], 0
    loop: start=0, step=1, limit=4
    $region2: #{tpu_custom_call.1} parent=1 // loop_pre_header
      _
    $region3: #{tpu_custom_call.1} parent=1 // loop_header
      %s12 = sphi 0, %s16
      %p13 = scmp.ge.s32.totalorder %s12, 4
      %s19 = sphi 0, %s31
      %s20 = sphi 0, %s27
      %s21 = sphi 0, %s19
      %s22 = sphi 0, %s20
      %s23 = sphi 0, %s21
      %s24 = sphi 0, %s22
      %s36 = sphi 0, %s38
      %s39 = sphi 0, %s36
      %s40 = sphi 0, %s39
      %s56 = sphi 0, %s40
      %s60 = sphi 0, %s60
      %s62 = sphi 0, %s60
      %s63 = sphi 0, %s62
      %s77 = sphi 0, %s63
      %s81 = sphi 0, %s81
      %s83 = sphi 0, %s81
      %s84 = sphi 0, %s83
      %s98 = sphi 0, %s84
      %s102 = sphi 0, %s102
      %s104 = sphi 0, %s102
      %s105 = sphi 0, %s104
      %s119 = sphi 0, %s105
      %s123 = sphi 0, %s123
      %s125 = sphi 0, %s123
      %s126 = sphi 0, %s125
      %s140 = sphi 0, %s126
      %s148 = sphi 0, %s150
      %s151 = sphi 0, %s148
      %s152 = sphi 0, %s151
      %s168 = sphi 0, %s152
    $region4: #{tpu_custom_call.1} parent=1 // loop_header_branch
      %15 = sbr.rel (%p13) target = $region8
    $region5: #{tpu_custom_call.1} parent=1 // loop_body
      %s17 = ssub.s32 %s12, 1
      %s18 = ssub.s32 %s12, 2
      %s25 = sadd.s32 1, %s20
      %p26 = scmp.ge.s32.totalorder %s25, 1
      %s27 = scalar_select %p26, 0, %s25
      %s28 = sadd.s32 1, %s19
      %s29 = scalar_select %p26, %s28, %s19
      %p30 = scmp.ge.s32.totalorder %s29, 2
      %s31 = scalar_select %p30, 0, %s29
      %s32 = ssub.s32 %s19, %s31
      %s33 = ssub.s32 %s20, %s27
      %s34 = sor.u32 %s32, %s33
      %p35 = scmp.eq.s32.totalorder %s34, 0
      %s37 = sadd.s32 %s36, 1
      %s38 = scalar_select %p35, %s36, %s37
      %p41 = pneg %p35
      %p42 = scmp.eq.s32.totalorder %s12, 1
      %p43 = por %p41, %p42
      %p44 = scmp.ne.s32.totalorder %s36, %s39
      %p45 = scmp.eq.s32.totalorder %s12, 0
      %p46 = por %p44, %p45
      %p47 = scmp.ne.s32.totalorder %s36, %s39
      %p48 = scmp.eq.s32.totalorder %s17, 1
      %p49 = por %p47, %p48
      %p50 = scmp.ne.s32.totalorder %s39, %s40
      %p51 = scmp.eq.s32.totalorder %s17, 0
      %p52 = por %p50, %p51
      %p53 = scmp.ne.s32.totalorder %s39, %s40
      %p54 = scmp.eq.s32.totalorder %s18, 1
      %p55 = por %p53, %p54
      %p57 = scmp.ne.s32.totalorder %s40, %s56
      %p58 = scmp.eq.s32.totalorder %s18, 0
      %p59 = por %p57, %p58
      %s61 = sadd.s32 %s60, 1
      %p64 = scmp.eq.s32.totalorder %s12, 1
      %p65 = scmp.ne.s32.totalorder %s60, %s62
      %p66 = scmp.eq.s32.totalorder %s12, 0
      %p67 = por %p65, %p66
      %p68 = scmp.ne.s32.totalorder %s60, %s62
      %p69 = scmp.eq.s32.totalorder %s17, 1
      %p70 = por %p68, %p69
      %p71 = scmp.ne.s32.totalorder %s62, %s63
      %p72 = scmp.eq.s32.totalorder %s17, 0
      %p73 = por %p71, %p72
      %p74 = scmp.ne.s32.totalorder %s62, %s63
      %p75 = scmp.eq.s32.totalorder %s18, 1
      %p76 = por %p74, %p75
      %p78 = scmp.ne.s32.totalorder %s63, %s77
      %p79 = scmp.eq.s32.totalorder %s18, 0
      %p80 = por %p78, %p79
      %s82 = sadd.s32 %s81, 1
      %p85 = scmp.eq.s32.totalorder %s12, 1
      %p86 = scmp.ne.s32.totalorder %s81, %s83
      %p87 = scmp.eq.s32.totalorder %s12, 0
      %p88 = por %p86, %p87
      %p89 = scmp.ne.s32.totalorder %s81, %s83
      %p90 = scmp.eq.s32.totalorder %s17, 1
      %p91 = por %p89, %p90
      %p92 = scmp.ne.s32.totalorder %s83, %s84
      %p93 = scmp.eq.s32.totalorder %s17, 0
      %p94 = por %p92, %p93
      %p95 = scmp.ne.s32.totalorder %s83, %s84
      %p96 = scmp.eq.s32.totalorder %s18, 1
      %p97 = por %p95, %p96
      %p99 = scmp.ne.s32.totalorder %s84, %s98
      %p100 = scmp.eq.s32.totalorder %s18, 0
      %p101 = por %p99, %p100
      %s103 = sadd.s32 %s102, 1
      %p106 = scmp.eq.s32.totalorder %s12, 1
      %p107 = scmp.ne.s32.totalorder %s102, %s104
      %p108 = scmp.eq.s32.totalorder %s12, 0
      %p109 = por %p107, %p108
      %p110 = scmp.ne.s32.totalorder %s102, %s104
      %p111 = scmp.eq.s32.totalorder %s17, 1
      %p112 = por %p110, %p111
      %p113 = scmp.ne.s32.totalorder %s104, %s105
      %p114 = scmp.eq.s32.totalorder %s17, 0
      %p115 = por %p113, %p114
      %p116 = scmp.ne.s32.totalorder %s104, %s105
      %p117 = scmp.eq.s32.totalorder %s18, 1
      %p118 = por %p116, %p117
      %p120 = scmp.ne.s32.totalorder %s105, %s119
      %p121 = scmp.eq.s32.totalorder %s18, 0
      %p122 = por %p120, %p121
      %s124 = sadd.s32 %s123, 1
      %p127 = scmp.eq.s32.totalorder %s12, 1
      %p128 = scmp.ne.s32.totalorder %s123, %s125
      %p129 = scmp.eq.s32.totalorder %s12, 0
      %p130 = por %p128, %p129
      %p131 = scmp.ne.s32.totalorder %s123, %s125
      %p132 = scmp.eq.s32.totalorder %s17, 1
      %p133 = por %p131, %p132
      %p134 = scmp.ne.s32.totalorder %s125, %s126
      %p135 = scmp.eq.s32.totalorder %s17, 0
      %p136 = por %p134, %p135
      %p137 = scmp.ne.s32.totalorder %s125, %s126
      %p138 = scmp.eq.s32.totalorder %s18, 1
      %p139 = por %p137, %p138
      %p141 = scmp.ne.s32.totalorder %s126, %s140
      %p142 = scmp.eq.s32.totalorder %s18, 0
      %p143 = por %p141, %p142
      %s144 = ssub.s32 %s19, %s31
      %s145 = ssub.s32 %s20, %s27
      %s146 = sor.u32 %s144, %s145
      %p147 = scmp.eq.s32.totalorder %s146, 0
      %s149 = sadd.s32 %s148, 1
      %s150 = scalar_select %p147, %s148, %s149
      %p153 = pneg %p147
      %p154 = scmp.eq.s32.totalorder %s12, 1
      %p155 = por %p153, %p154
      %p156 = scmp.ne.s32.totalorder %s148, %s151
      %p157 = scmp.eq.s32.totalorder %s12, 0
      %p158 = por %p156, %p157
      %p159 = scmp.ne.s32.totalorder %s148, %s151
      %p160 = scmp.eq.s32.totalorder %s17, 1
      %p161 = por %p159, %p160
      %p162 = scmp.ne.s32.totalorder %s151, %s152
      %p163 = scmp.eq.s32.totalorder %s17, 0
      %p164 = por %p162, %p163
      %p165 = scmp.ne.s32.totalorder %s151, %s152
      %p166 = scmp.eq.s32.totalorder %s18, 1
      %p167 = por %p165, %p166
      %p169 = scmp.ne.s32.totalorder %s152, %s168
      %p170 = scmp.eq.s32.totalorder %s18, 0
      %p171 = por %p169, %p170
      %p172 = scmp.le.s32.totalorder 1, %s12
      %p173 = scmp.lt.s32.totalorder %s12, 3
      %p174 = pnand %p172, %p173
      %p175 = pneg %p174
      // Predicated region
      $region9: #{tpu_custom_call.1} parent=5 // pred_check
        _
      $region10: #{tpu_custom_call.1} parent=5 // pred_check_branch
        %177 = sbr.rel (%p174) target = $region12
      $region11: #{tpu_custom_call.1} parent=5 // pred_region
        %s178 = ssub.s32 %s12, 1
        // Predicated region
        $region13: #{tpu_custom_call.1} parent=11 // pred_check
          %p179 = pneg %p73
        $region14: #{tpu_custom_call.1} parent=11 // pred_check_branch
          %181 = sbr.rel (%p179) target = $region16
        $region15: #{tpu_custom_call.1} parent=11 // pred_region
          _
        $region16: #{tpu_custom_call.1} parent=11 // pred_fallthru
          _
        // Predicated region
        $region17: #{tpu_custom_call.1} parent=11 // pred_check
          %p182 = pneg %p94
        $region18: #{tpu_custom_call.1} parent=11 // pred_check_branch
          %184 = sbr.rel (%p182) target = $region20
        $region19: #{tpu_custom_call.1} parent=11 // pred_region
          _
        $region20: #{tpu_custom_call.1} parent=11 // pred_fallthru
          _
        // Predicated region
        $region21: #{tpu_custom_call.1} parent=11 // pred_check
          %p185 = pneg %p115
        $region22: #{tpu_custom_call.1} parent=11 // pred_check_branch
          %187 = sbr.rel (%p185) target = $region24
        $region23: #{tpu_custom_call.1} parent=11 // pred_region
          %189 = vsyncadd [#allocation3], 0
          %s190 = sshll.u32 %s3, 4
          %s191 = int_to_ptr.hbm [resolvable:$true] %s190
          %s192 = sshll.u32 [#allocation2], 4
          %s193 = int_to_ptr.vmem [resolvable:$true] %s192
          %198 = dma.hbm_to_vmem [thread:$0]  %s191, 2048, %s193, [#allocation3], 128, 128, 8
        $region24: #{tpu_custom_call.1} parent=11 // pred_fallthru
          _
        // Predicated region
        $region25: #{tpu_custom_call.1} parent=11 // pred_check
          %p199 = pneg %p136
        $region26: #{tpu_custom_call.1} parent=11 // pred_check_branch
          %201 = sbr.rel (%p199) target = $region28
        $region27: #{tpu_custom_call.1} parent=11 // pred_region
          _
        $region28: #{tpu_custom_call.1} parent=11 // pred_fallthru
          _
      $region12: #{tpu_custom_call.1} parent=5 // pred_fallthru
        _
      %p202 = scmp.lt.s32.totalorder %s12, 2
      // Predicated region
      $region29: #{tpu_custom_call.1} parent=5 // pred_check
        %p203 = pneg %p202
      $region30: #{tpu_custom_call.1} parent=5 // pred_check_branch
        %205 = sbr.rel (%p203) target = $region32
      $region31: #{tpu_custom_call.1} parent=5 // pred_region
        // Predicated region
        $region33: #{tpu_custom_call.1} parent=31 // pred_check
          %p206 = pneg %p46
        $region34: #{tpu_custom_call.1} parent=31 // pred_check_branch
          %208 = sbr.rel (%p206) target = $region36
        $region35: #{tpu_custom_call.1} parent=31 // pred_region
          %s209 = smul.u32 2, %s20
          %p210 = scmp.lt.s32.totalorder %s19, 1
          %s211 = scalar_select %p210, %s19, 1
          %p212 = scmp.lt.s32.totalorder %s209, 1
          %s213 = scalar_select %p212, %s209, 1
          %s214 = smul.addr %s211, 2
          %s215 = sadd.s32 %s213, %s214
          %s216 = smul.addr %s215, 8
          %s217 = scalar_lea.vmem %s0, %s216
          %s218 = smul.u32 2, %s20
        $region36: #{tpu_custom_call.1} parent=31 // pred_fallthru
          _
      $region32: #{tpu_custom_call.1} parent=5 // pred_fallthru
        _
      %p219 = scmp.le.s32.totalorder 1, %s12
      %p220 = scmp.lt.s32.totalorder %s12, 3
      %p221 = pnand %p219, %p220
      %p222 = pneg %p221
      // Predicated region
      $region37: #{tpu_custom_call.1} parent=5 // pred_check
        _
      $region38: #{tpu_custom_call.1} parent=5 // pred_check_branch
        %224 = sbr.rel (%p221) target = $region40
      $region39: #{tpu_custom_call.1} parent=5 // pred_region
        %s225 = ssub.s32 %s12, 1
        // Predicated region
        $region41: #{tpu_custom_call.1} parent=39 // pred_check
          %p226 = pneg %p115
        $region42: #{tpu_custom_call.1} parent=39 // pred_check_branch
          %228 = sbr.rel (%p226) target = $region44
        $region43: #{tpu_custom_call.1} parent=39 // pred_region
          %230 = dma.done [#allocation3], 2048
        $region44: #{tpu_custom_call.1} parent=39 // pred_fallthru
          _
        %s231 = smul.u32 2, %s22
        %p232 = scmp.lt.s32.totalorder %s21, 1
        %s233 = scalar_select %p232, %s21, 1
        %p234 = scmp.lt.s32.totalorder %s231, 1
        %s235 = scalar_select %p234, %s231, 1
        %s236 = smul.addr %s233, 2
        %s237 = sadd.s32 %s235, %s236
        %s238 = smul.addr %s237, 8
        %s239 = scalar_lea.vmem %s0, %s238
        %p240 = pneg %p52
        %p241 = pneg %p49
        %p242 = pneg %p73
        %p243 = pneg %p70
        %p244 = pneg %p94
        %p245 = pneg %p91
        %p246 = pneg %p115
        %p247 = pneg %p112
        %p248 = pneg %p136
        %p249 = pneg %p133
        %p250 = pneg %p164
        %p251 = pneg %p161
        %s252 = smul.u32 2, %s22
        %p253 = scmp.lt.s32.totalorder %s21, 1
        %s254 = scalar_select %p253, %s21, 1
        %p255 = scmp.lt.s32.totalorder %s252, 1
        %s256 = scalar_select %p255, %s252, 1
        %s257 = smul.addr %s254, 2
        %s258 = sadd.s32 %s256, %s257
        %s259 = smul.addr %s258, 8
        %s260 = scalar_lea.vmem %s5, %s259
        %s261 = smul.u32 2, %s22
        %p262 = scmp.lt.s32.totalorder %s21, 1
        %s263 = scalar_select %p262, %s21, 1
        %p264 = scmp.lt.s32.totalorder %s261, 1
        %s265 = scalar_select %p264, %s261, 1
        %s266 = smul.addr %s263, 2
        %s267 = sadd.s32 %s265, %s266
        %s268 = smul.addr %s267, 8
        %s269 = scalar_lea.vmem %s0, %s268
        %s270 = smul.u32 2, %s22
        %s271 = smul.u32 2, %s22
        %p272 = scmp.lt.s32.totalorder %s21, 1
        %s273 = scalar_select %p272, %s21, 1
        %p274 = scmp.lt.s32.totalorder %s271, 1
        %s275 = scalar_select %p274, %s271, 1
        %s276 = smul.addr %s273, 2
        %s277 = sadd.s32 %s275, %s276
        %s278 = smul.addr %s277, 8
        %s279 = scalar_lea.vmem %s5, %s278
        %s280 = smul.u32 2, %s22
        %v281 = vld [vmem:[%s269] sm:$0xff]
        %v282 = vld [vmem:[%s269 + $0x8] sm:$0x7f]
        %v283 = vld [vmem:[%s1] sm:$0xff]
        %v284 = vld [vmem:[%s1 + $0x8] sm:$0xff]
        %v285 = vld [vmem:[%s1 + $0x10] sm:$0xff]
        %v286 = vld [vmem:[%s1 + $0x18] sm:$0xff]
        %v287 = vld [vmem:[%s1 + $0x20] sm:$0xf]
        %v288 = vld [vmem:[%s1 + $0x28] sm:$0xf]
        %v289 = vld [vmem:[%s2] sm:$0x3]
        %v291 = vperm.slane %v289, 0
        %v292 = vperm.slane %v289, 1
        %vm295 = vcmask 162816
        %v297 = vsel %vm295, %v281, 0
        %v300 = vsel %vm295, %v282, 0
        %vm302 = vcmask 1043456
        %v304 = vsel %vm302, %v287, 0
        %v307 = vsel %vm302, %v288, 0
        %309 = vmatpush.msra.mxu0 0.0
        %310 = vmatpush.msra.mxu0 0.0
        %311 = vmatpush.msra.mxu0 0.0
        %312 = vmatpush.msra.mxu0 0.0
        %313 = vmatpush.msra.mxu0 0.0
        %314 = vmatpush.msra.mxu0 0.0
        %315 = vmatpush.msra.mxu0 0.0
        %316 = vmatpush.msra.mxu0 0.0
        %317 = vmatpush.msra.mxu0 0.0
        %318 = vmatpush.msra.mxu0 0.0
        %319 = vmatpush.msra.mxu0 0.0
        %320 = vmatpush.msra.mxu0 0.0
        %321 = vmatpush.msra.mxu0 0.0
        %322 = vmatpush.msra.mxu0 %v304
        %323 = vmatpush.msra.mxu0 %v285
        %324 = vmatpush.msra.mxu0 %v283
        %325 = vmatmul.f32.gmra.mxu0 %v297
        %v326 = vpop.f32.mrf.mxu0
        %v327 = vadd.f32 %v291, %v326
        %328 = vmatmul.f32.gmra.mxu0 %v300
        %v329 = vpop.f32.mrf.mxu0
        %v330 = vadd.f32 %v291, %v329
        %331 = vdwg.mxu0
        %332 = vmatpush.msra.mxu0 0.0
        %333 = vmatpush.msra.mxu0 0.0
        %334 = vmatpush.msra.mxu0 0.0
        %335 = vmatpush.msra.mxu0 0.0
        %336 = vmatpush.msra.mxu0 0.0
        %337 = vmatpush.msra.mxu0 0.0
        %338 = vmatpush.msra.mxu0 0.0
        %339 = vmatpush.msra.mxu0 0.0
        %340 = vmatpush.msra.mxu0 0.0
        %341 = vmatpush.msra.mxu0 0.0
        %342 = vmatpush.msra.mxu0 0.0
        %343 = vmatpush.msra.mxu0 0.0
        %344 = vmatpush.msra.mxu0 0.0
        %345 = vmatpush.msra.mxu0 %v307
        %346 = vmatpush.msra.mxu0 %v286
        %347 = vmatpush.msra.mxu0 %v284
        %348 = vmatmul.f32.gmra.mxu0 %v297
        %v349 = vpop.f32.mrf.mxu0
        %v350 = vadd.f32 %v292, %v349
        %351 = vmatmul.f32.gmra.mxu0 %v300
        %v352 = vpop.f32.mrf.mxu0
        %v353 = vadd.f32 %v292, %v352
        %354 = vdwg.mxu0
        %v355 = vxor.u32 %v327, 2147483648
        %v356 = vxor.u32 %v330, 2147483648
        %v357 = vmul.f32 %v355, 1.442695
        %v358 = vpow.pop %v357
        %v359 = vmul.f32 %v356, 1.442695
        %v360 = vpow.pop %v359
        %v361 = vadd.f32 %v358, 1.0
        %v362 = vadd.f32 %v360, 1.0
        %v363 = vrcp.pop %v361
        %v364 = vmul.f32 %v361, %v363
        %v365 = vsub.f32 1.0, %v364
        %v366 = vmul.f32 %v363, %v365
        %v367 = vadd.f32 %v363, %v366
        %vm368 = vweird.f32 %v361
        %vm369 = vweird.f32 %v363
        %vm370 = vmor %vm368, %vm369
        %v371 = vsel %vm370, %v363, %v367
        %v372 = vand.u32 2147483647, %v361
        %vm373 = vcmp.eq.f32.partialorder %v372, 8.507059e+37
        %v374 = vand.u32 %v361, 2147483648
        %v375 = vor.u32 1.1754944e-38, %v374
        %v376 = vsel %vm373, %v375, %v371
        %v377 = vmul.f32 1.0, %v376
        %v378 = vrcp.pop %v362
        %v379 = vmul.f32 %v362, %v378
        %v380 = vsub.f32 1.0, %v379
        %v381 = vmul.f32 %v378, %v380
        %v382 = vadd.f32 %v378, %v381
        %vm383 = vweird.f32 %v362
        %vm384 = vweird.f32 %v378
        %vm385 = vmor %vm383, %vm384
        %v386 = vsel %vm385, %v378, %v382
        %v387 = vand.u32 2147483647, %v362
        %vm388 = vcmp.eq.f32.partialorder %v387, 8.507059e+37
        %v389 = vand.u32 %v362, 2147483648
        %v390 = vor.u32 1.1754944e-38, %v389
        %v391 = vsel %vm388, %v390, %v386
        %v392 = vmul.f32 1.0, %v391
        %v393 = vtanh.pop %v350
        %v394 = vtanh.pop %v353
        %v395 = vmul.f32 %v377, %v393
        %v396 = vmul.f32 %v392, %v394
        %v397 = vld [vmem:[#allocation2] sm:$0xff]
        %v398 = vld [vmem:[#allocation2 + $0x8] sm:$0xff]
        %v399 = vld [vmem:[#allocation2 + $0x10] sm:$0xff]
        %v400 = vld [vmem:[#allocation2 + $0x18] sm:$0xff]
        %v401 = vld [vmem:[#allocation2 + $0x20] sm:$0xff]
        %v402 = vld [vmem:[#allocation2 + $0x28] sm:$0xff]
        %v403 = vld [vmem:[#allocation2 + $0x30] sm:$0xff]
        %v404 = vld [vmem:[#allocation2 + $0x38] sm:$0xff]
        %v405 = vld [vmem:[#allocation2 + $0x40] sm:$0xff]
        %v406 = vld [vmem:[#allocation2 + $0x48] sm:$0xff]
        %v407 = vld [vmem:[#allocation2 + $0x50] sm:$0xff]
        %v408 = vld [vmem:[#allocation2 + $0x58] sm:$0xff]
        %v409 = vld [vmem:[#allocation2 + $0x60] sm:$0xff]
        %v410 = vld [vmem:[#allocation2 + $0x68] sm:$0xff]
        %v411 = vld [vmem:[#allocation2 + $0x70] sm:$0xff]
        %v412 = vld [vmem:[#allocation2 + $0x78] sm:$0xff]
        %v413 = vld [vmem:[%s4] sm:$0x1]
        %v415 = vperm.slane %v413, 0
        %417 = vmatpush.msra.mxu0 %v412
        %418 = vmatpush.msra.mxu0 %v411
        %419 = vmatpush.msra.mxu0 %v410
        %420 = vmatpush.msra.mxu0 %v409
        %421 = vmatpush.msra.mxu0 %v408
        %422 = vmatpush.msra.mxu0 %v407
        %423 = vmatpush.msra.mxu0 %v406
        %424 = vmatpush.msra.mxu0 %v405
        %425 = vmatpush.msra.mxu0 %v404
        %426 = vmatpush.msra.mxu0 %v403
        %427 = vmatpush.msra.mxu0 %v402
        %428 = vmatpush.msra.mxu0 %v401
        %429 = vmatpush.msra.mxu0 %v400
        %430 = vmatpush.msra.mxu0 %v399
        %431 = vmatpush.msra.mxu0 %v398
        %432 = vmatpush.msra.mxu0 %v397
        %433 = vmatmul.f32.gmra.mxu0 %v395
        %v434 = vpop.f32.mrf.mxu0
        %v435 = vadd.f32 %v415, %v434
        %436 = vmatmul.f32.gmra.mxu0 %v396
        %v437 = vpop.f32.mrf.mxu0
        %v438 = vadd.f32 %v415, %v437
        %439 = vdwg.mxu0
        %440 = vst [vmem:[%s279] sm:$0xff] %v435
        %441 = vst [vmem:[%s279 + $0x8] sm:$0x7f] %v438
        %s442 = smul.u32 2, %s22
        %p443 = scmp.lt.s32.totalorder %s21, 1
        %s444 = scalar_select %p443, %s21, 1
        %p445 = scmp.lt.s32.totalorder %s442, 1
        %s446 = scalar_select %p445, %s442, 1
        %s447 = smul.addr %s444, 2
        %s448 = sadd.s32 %s446, %s447
        %s449 = smul.addr %s448, 8
        %s450 = scalar_lea.vmem %s5, %s449
        // Predicated region
        $region45: #{tpu_custom_call.1} parent=39 // pred_check
          %p451 = pneg %p161
        $region46: #{tpu_custom_call.1} parent=39 // pred_check_branch
          %453 = sbr.rel (%p451) target = $region48
        $region47: #{tpu_custom_call.1} parent=39 // pred_region
          %s454 = smul.u32 2, %s22
        $region48: #{tpu_custom_call.1} parent=39 // pred_fallthru
          _
      $region40: #{tpu_custom_call.1} parent=5 // pred_fallthru
        _
      %p455 = scmp.le.s32.totalorder 2, %s12
      // Predicated region
      $region49: #{tpu_custom_call.1} parent=5 // pred_check
        %p456 = pneg %p455
      $region50: #{tpu_custom_call.1} parent=5 // pred_check_branch
        %458 = sbr.rel (%p456) target = $region52
      $region51: #{tpu_custom_call.1} parent=5 // pred_region
        %s459 = ssub.s32 %s12, 2
        // Predicated region
        $region53: #{tpu_custom_call.1} parent=51 // pred_check
          %p460 = pneg %p167
        $region54: #{tpu_custom_call.1} parent=51 // pred_check_branch
          %462 = sbr.rel (%p460) target = $region56
        $region55: #{tpu_custom_call.1} parent=51 // pred_region
          %s463 = smul.u32 2, %s24
          %p464 = scmp.lt.s32.totalorder %s23, 1
          %s465 = scalar_select %p464, %s23, 1
          %p466 = scmp.lt.s32.totalorder %s463, 1
          %s467 = scalar_select %p466, %s463, 1
          %s468 = smul.addr %s465, 2
          %s469 = sadd.s32 %s467, %s468
          %s470 = smul.addr %s469, 8
          %s471 = scalar_lea.vmem %s5, %s470
        $region56: #{tpu_custom_call.1} parent=51 // pred_fallthru
          _
      $region52: #{tpu_custom_call.1} parent=5 // pred_fallthru
        _
    $region6: #{tpu_custom_call.1} parent=1 // loop_footer
      %s16 = sadd.s32 1, %s12
    $region7: #{tpu_custom_call.1} parent=1 // loop_footer_branch
      %11 = sbr.rel target = $region3
    $region8: #{tpu_custom_call.1} parent=1 // loop_exit
      _
    %472 = vsyncpa [#allocation3], 1
    %s473 = scalar_lea.sflag [#allocation3], 1
    %474 = vsyncpa %s473, 1

</llo_original>
